<compile_context>
chip_gen: v6e
topology: v6e:2x2x1
jax: 0.10.0
libtpu: 0.0.40
codegen_flags: <defaults>
</compile_context>

<pallas_src>
import jax
import jax.numpy as jnp
from jax.experimental import pallas as pl
from jax.experimental.pallas import tpu as pltpu


def _round_up(x, m):
    return ((x + m - 1) // m) * m


def _cdiv(a, b):
    return -(-a // b)


def _pick_tile_n(n, tile_n):
    """Large node tile (fills MXU rows / bf16 vregs), but guarantee >= 2 grid
    steps when the problem allows it so the parallel axis can shard across
    both v7x TensorCores."""
    tile = max(16, _round_up(min(tile_n, n), 16))
    if _cdiv(n, tile) < 2:
        tile = max(16, _round_up(_cdiv(n, 2), 16))
    return tile


def _vmem_limit_bytes():
    """Generation-aware VMEM budget: ~80% of physical per-core VMEM, capped at
    100 MiB (v5e/v6e: 128 MiB physical; v7x: 64 MiB per TensorCore)."""
    try:
        cap = int(pltpu.get_tpu_info().vmem_capacity_bytes)
    except Exception:
        cap = 64 * 1024 * 1024
    return int(min(cap * 0.8, 100 * 1024 * 1024))


def linear_projector(price, w_price, b_price,
                     genre_idx, genre_emb,
                     title_tok, title_len, title_emb,
                     w_title, b_title,
                     *, tile_n=256, out_dtype=jnp.float32):
    """Fused PinSAGE LinearProjector forward.

    price      : (N, Fp) f32      w_price   : (Fp, H)   b_price : (H,)
    genre_idx  : (N,)    int      genre_emb : (Vg, H)
    title_tok  : (N, S)  int      title_emb : (Vt, Dt)  (frozen, pretrained)
    title_len  : (N,)    int      w_title   : (Dt, H)   b_title : (H,)
    returns (N, H) f32.
    """
    n, fp = price.shape
    h = w_price.shape[1]
    dt = title_emb.shape[1]

    h_pad = _round_up(h, 128)                 # lane-dense output & weight cols
    tile = _pick_tile_n(n, tile_n)
    n_pad = _round_up(n, tile)
    pad_n = n_pad - n

    # ---- embedding-row gathers (XLA native gather; replaces one-hot@table) --
    genre_rows = jnp.take(genre_emb, genre_idx.astype(jnp.int32), axis=0)   # (N, H)
    bow = jnp.take(title_emb, title_tok.astype(jnp.int32), axis=0).sum(1)   # (N, Dt)

    # ---- pad node axis to a tile multiple (pad lengths with 1 -> finite 1/len)
    price_p = jnp.pad(price.astype(jnp.float32), ((0, pad_n), (0, 0)))
    bow_p = jnp.pad(bow.astype(jnp.float32), ((0, pad_n), (0, 0)))
    genre_p = jnp.pad(genre_rows.astype(jnp.float32),
                      ((0, pad_n), (0, h_pad - h)))             # lane-dense add operand
    tlen_p = jnp.pad(title_len.astype(jnp.float32).reshape(n, 1),
                     ((0, pad_n), (0, 0)), constant_values=1.0)

    # ---- resident (constant block index) weights, H padded to 128 lanes -----
    wp = jnp.zeros((fp, h_pad), jnp.float32).at[:, :h].set(w_price)
    wt = jnp.zeros((dt, h_pad), jnp.float32).at[:, :h].set(w_title)
    bias = jnp.zeros((1, h_pad), jnp.float32).at[0, :h].set(b_price + b_title)

    def kernel(price_ref, bow_ref, tlen_ref, genre_ref, wp_ref, wt_ref, b_ref,
               out_ref):
        # exact per-row reciprocal of the bag-of-words length (review note)
        inv_len = 1.0 / tlen_ref[...]                              # (tile, 1)

        # Linear(price): bf16 operands on the MXU, f32 accumulation
        acc = jnp.dot(price_ref[...].astype(jnp.bfloat16),
                      wp_ref[...].astype(jnp.bfloat16),
                      preferred_element_type=jnp.float32)

        # BagOfWordsPretrained.proj( Emb(title).sum(1) / len )
        bow_scaled = bow_ref[...] * inv_len
        acc = acc + jnp.dot(bow_scaled.astype(jnp.bfloat16),
                            wt_ref[...].astype(jnp.bfloat16),
                            preferred_element_type=jnp.float32)

        # Embedding(genre) row + (b_price + b_title)
        acc = acc + genre_ref[...] + b_ref[...]

        out_ref[...] = acc.astype(out_ref.dtype)

    grid = (n_pad // tile,)
    out = pl.pallas_call(
        kernel,
        out_shape=jax.ShapeDtypeStruct((n_pad, h_pad), out_dtype),
        grid=grid,
        in_specs=[
            pl.BlockSpec((tile, fp), lambda i: (i, 0)),        # price features
            pl.BlockSpec((tile, dt), lambda i: (i, 0)),        # title BOW (pre-proj)
            pl.BlockSpec((tile, 1), lambda i: (i, 0)),         # title length
            pl.BlockSpec((tile, h_pad), lambda i: (i, 0)),     # genre embedding rows
            pl.BlockSpec((fp, h_pad), lambda i: (0, 0)),       # w_price (resident)
            pl.BlockSpec((dt, h_pad), lambda i: (0, 0)),       # w_title (resident)
            pl.BlockSpec((1, h_pad), lambda i: (0, 0)),        # bias (resident)
        ],
        out_specs=pl.BlockSpec((tile, h_pad), lambda i: (i, 0)),
        compiler_params=pltpu.CompilerParams(
            dimension_semantics=("parallel",),
            vmem_limit_bytes=_vmem_limit_bytes()),
    )(price_p, bow_p, tlen_p, genre_p, wp, wt, bias)

    # Consumers that accept a (n_pad, 128)-padded layout should skip this slice
    # (it costs an extra HBM pass); kept here to return the module's (N, H).
    return out[:n, :h].astype(jnp.float32)


def _xavier_uniform(key, shape):
    fan_in, fan_out = shape[0], shape[1]
    limit = (6.0 / (fan_in + fan_out)) ** 0.5
    return jax.random.uniform(key, shape, jnp.float32, -limit, limit)


if __name__ == "__main__":
    N, H = 30, 32          # nodes (non-multiple of tile to exercise padding), hidden_dims
    Fp = 16                # float feature dim
    Vg = 12                # categorical vocab (max(x)+2)
    S, Vt, Dt = 8, 40, 24  # text seq len, text vocab, pretrained emb dim

    key = jax.random.PRNGKey(0)
    ks = jax.random.split(key, 10)

    # node features
    price = jax.random.normal(ks[0], (N, Fp), jnp.float32)
    genre_idx = jax.random.randint(ks[1], (N,), 0, Vg, jnp.int32)
    title_tok = jax.random.randint(ks[2], (N, S), 0, Vt, jnp.int32)
    title_len = jax.random.randint(ks[3], (N,), 1, S + 1, jnp.int32)

    # parameters (deterministic in-script init; biases zero as in the module)
    w_price = _xavier_uniform(ks[4], (Fp, H))           # Linear weight, stored (in, out)
    b_price = jnp.zeros((H,), jnp.float32)
    genre_emb = _xavier_uniform(ks[5], (Vg, H))         # Embedding table
    title_emb = jax.random.normal(ks[6], (Vt, Dt), jnp.float32) * 0.1  # "pretrained"
    w_title = _xavier_uniform(ks[7], (Dt, H))           # BagOfWordsPretrained.proj
    b_title = jnp.zeros((H,), jnp.float32)

    # tile_n=256 default; for this tiny N the tile picker shrinks it so the
    # parallel grid still has 2 steps (both v7x TensorCores get work).
    run = jax.jit(lambda *a: linear_projector(*a, tile_n=256))
    out = run(price, w_price, b_price,
              genre_idx, genre_emb,
              title_tok, title_len, title_emb,
              w_title, b_title)
    out = jax.block_until_ready(out)

    # plain-JAX f32 reference (kernel uses bf16 MXU operands -> small tolerance)
    ref_price = price @ w_price + b_price
    ref_genre = genre_emb[genre_idx]
    ref_bow = title_emb[title_tok].sum(1) / title_len[:, None].astype(jnp.float32)
    ref_title = ref_bow @ w_title + b_title
    ref = ref_price + ref_genre + ref_title

    assert out.shape == (N, H)
    assert jnp.allclose(out, ref, atol=3e-2, rtol=3e-2), (
        float(jnp.max(jnp.abs(out - ref))))
    print("KERNEL_OK")
</pallas_src>

<mosaic_0001>
module attributes {stable_mosaic.version = 11 : i64} {
  func.func @kernel(%arg0: i32, %arg1: memref<16x16xf32, #tpu.memory_space<vmem>>, %arg2: memref<16x24xf32, #tpu.memory_space<vmem>>, %arg3: memref<16x1xf32, #tpu.memory_space<vmem>>, %arg4: memref<16x128xf32, #tpu.memory_space<vmem>>, %arg5: memref<16x128xf32, #tpu.memory_space<vmem>>, %arg6: memref<24x128xf32, #tpu.memory_space<vmem>>, %arg7: memref<1x128xf32, #tpu.memory_space<vmem>>, %arg8: memref<16x128xf32, #tpu.memory_space<vmem>>) attributes {dimension_semantics = [#tpu.dimension_semantics<parallel>], iteration_bounds = array<i64: 2>, scalar_prefetch = 0 : i64, scratch_operands = 0 : i64, tpu.core_type = #tpu.core_type<tc>, window_params = [{transform_indices = @transform_0, window_bounds = array<i64: 16, 16>}, {transform_indices = @transform_1, window_bounds = array<i64: 16, 24>}, {transform_indices = @transform_2, window_bounds = array<i64: 16, 1>}, {transform_indices = @transform_3, window_bounds = array<i64: 16, 128>}, {pipeline_mode = #tpu.pipeline_mode<synchronous>, transform_indices = @transform_4, window_bounds = array<i64: 16, 128>}, {pipeline_mode = #tpu.pipeline_mode<synchronous>, transform_indices = @transform_5, window_bounds = array<i64: 24, 128>}, {pipeline_mode = #tpu.pipeline_mode<synchronous>, transform_indices = @transform_6, window_bounds = array<i64: 1, 128>}, {transform_indices = @transform_7, window_bounds = array<i64: 16, 128>}]} {
    %c0 = arith.constant 0 : index
    %c0_0 = arith.constant 0 : index
    %0 = vector.load %arg3[%c0, %c0_0] : memref<16x1xf32, #tpu.memory_space<vmem>>, vector<16x1xf32>
    %cst = arith.constant 1.000000e+00 : f32
    %1 = vector.broadcast %cst : f32 to vector<16x1xf32>
    %2 = arith.divf %1, %0 : vector<16x1xf32>
    %c0_1 = arith.constant 0 : index
    %c0_2 = arith.constant 0 : index
    %3 = vector.load %arg1[%c0_1, %c0_2] : memref<16x16xf32, #tpu.memory_space<vmem>>, vector<16x16xf32>
    %4 = arith.truncf %3 : vector<16x16xf32> to vector<16x16xbf16>
    %c0_3 = arith.constant 0 : index
    %c0_4 = arith.constant 0 : index
    %5 = vector.load %arg5[%c0_3, %c0_4] : memref<16x128xf32, #tpu.memory_space<vmem>>, vector<16x128xf32>
    %6 = arith.truncf %5 : vector<16x128xf32> to vector<16x128xbf16>
    %cst_5 = arith.constant dense<0.000000e+00> : vector<16x128xf32>
    %7 = tpu.matmul %4, %6, %cst_5 {dimension_numbers = #tpu.dot_dimension_numbers<[1], [0], [0], [1], [0, 0, 1, 1], [], []>} : vector<16x16xbf16>, vector<16x128xbf16>, vector<16x128xf32> -> vector<16x128xf32>
    %c0_6 = arith.constant 0 : index
    %c0_7 = arith.constant 0 : index
    %8 = vector.load %arg2[%c0_6, %c0_7] : memref<16x24xf32, #tpu.memory_space<vmem>>, vector<16x24xf32>
    %9 = vector.broadcast %2 : vector<16x1xf32> to vector<16x24xf32>
    %10 = arith.mulf %8, %9 : vector<16x24xf32>
    %11 = arith.truncf %10 : vector<16x24xf32> to vector<16x24xbf16>
    %c0_8 = arith.constant 0 : index
    %c0_9 = arith.constant 0 : index
    %12 = vector.load %arg6[%c0_8, %c0_9] : memref<24x128xf32, #tpu.memory_space<vmem>>, vector<24x128xf32>
    %13 = arith.truncf %12 : vector<24x128xf32> to vector<24x128xbf16>
    %cst_10 = arith.constant dense<0.000000e+00> : vector<16x128xf32>
    %14 = tpu.matmul %11, %13, %cst_10 {dimension_numbers = #tpu.dot_dimension_numbers<[1], [0], [0], [1], [0, 0, 1, 1], [], []>} : vector<16x24xbf16>, vector<24x128xbf16>, vector<16x128xf32> -> vector<16x128xf32>
    %15 = arith.addf %7, %14 : vector<16x128xf32>
    %c0_11 = arith.constant 0 : index
    %c0_12 = arith.constant 0 : index
    %16 = vector.load %arg4[%c0_11, %c0_12] : memref<16x128xf32, #tpu.memory_space<vmem>>, vector<16x128xf32>
    %17 = arith.addf %15, %16 : vector<16x128xf32>
    %c0_13 = arith.constant 0 : index
    %c0_14 = arith.constant 0 : index
    %18 = vector.load %arg7[%c0_13, %c0_14] : memref<1x128xf32, #tpu.memory_space<vmem>>, vector<1x128xf32>
    %19 = vector.broadcast %18 : vector<1x128xf32> to vector<16x128xf32>
    %20 = arith.addf %17, %19 : vector<16x128xf32>
    %c0_15 = arith.constant 0 : index
    %c0_16 = arith.constant 0 : index
    %21 = vector.load %arg8[%c0_15, %c0_16] : memref<16x128xf32, #tpu.memory_space<vmem>>, vector<16x128xf32>
    tpu.vector_store %arg8[%c0_15, %c0_16], %20 {strides = array<i32>} : memref<16x128xf32, #tpu.memory_space<vmem>>, vector<16x128xf32>,
    return
  }
  func.func @transform_0(%arg0: i32) -> (i32, i32) {
    %c0_i32 = arith.constant 0 : i32
    %c0_i32_0 = arith.constant 0 : i32
    return %arg0, %c0_i32 : i32, i32
  }
  func.func @transform_1(%arg0: i32) -> (i32, i32) {
    %c0_i32 = arith.constant 0 : i32
    %c0_i32_0 = arith.constant 0 : i32
    return %arg0, %c0_i32 : i32, i32
  }
  func.func @transform_2(%arg0: i32) -> (i32, i32) {
    %c0_i32 = arith.constant 0 : i32
    %c0_i32_0 = arith.constant 0 : i32
    return %arg0, %c0_i32 : i32, i32
  }
  func.func @transform_3(%arg0: i32) -> (i32, i32) {
    %c0_i32 = arith.constant 0 : i32
    %c0_i32_0 = arith.constant 0 : i32
    return %arg0, %c0_i32 : i32, i32
  }
  func.func @transform_4(%arg0: i32) -> (i32, i32) {
    %c0_i32 = arith.constant 0 : i32
    %c0_i32_0 = arith.constant 0 : i32
    %c0_i32_1 = arith.constant 0 : i32
    return %c0_i32, %c0_i32_0 : i32, i32
  }
  func.func @transform_5(%arg0: i32) -> (i32, i32) {
    %c0_i32 = arith.constant 0 : i32
    %c0_i32_0 = arith.constant 0 : i32
    %c0_i32_1 = arith.constant 0 : i32
    return %c0_i32, %c0_i32_0 : i32, i32
  }
  func.func @transform_6(%arg0: i32) -> (i32, i32) {
    %c0_i32 = arith.constant 0 : i32
    %c0_i32_0 = arith.constant 0 : i32
    %c0_i32_1 = arith.constant 0 : i32
    return %c0_i32, %c0_i32_0 : i32, i32
  }
  func.func @transform_7(%arg0: i32) -> (i32, i32) {
    %c0_i32 = arith.constant 0 : i32
    %c0_i32_0 = arith.constant 0 : i32
    return %arg0, %c0_i32 : i32, i32
  }
}

</mosaic_0001>

<llo_original>
// kernel: _lambda_.1
$region0: #{_lambda_.1}
  #allocation0 [shape = 'u32[]', space=smem, size = 0x4, offset = 0x4, fixed_abs, tag = 'smem constant byte address 0x4 - core index']
  #allocation1 [shape = 'u32[144,128]{1,0:T(1,128)}', space=vmem, size = 0x12000, scoped, tag = 'internal scratch']
  %s0 = inlined_call_operand.vmem [shape: f32[32,16], index: 0, kind: input, shape index: {}]
  %s1 = inlined_call_operand.vmem [shape: f32[32,24], index: 1, kind: input, shape index: {}]
  %s2 = inlined_call_operand.vmem [shape: f32[32,1], index: 2, kind: input, shape index: {}]
  %s3 = inlined_call_operand.vmem [shape: f32[32,128], index: 3, kind: input, shape index: {}]
  %s4 = inlined_call_operand.vmem [shape: f32[16,128], index: 4, kind: input, shape index: {}]
  %s5 = inlined_call_operand.vmem [shape: f32[24,128], index: 5, kind: input, shape index: {}]
  %s6 = inlined_call_operand.vmem [shape: f32[1,128], index: 6, kind: input, shape index: {}]
  %s7 = inlined_call_operand.hbm [shape: f32[32,128], index: 7, kind: output, shape index: {}]
  %s8 = sld [smem:[#allocation0]]
  $region61: #{_lambda_.1} parent=0
    _
  %s10 = ssub.s32 1, %s8
  %s11 = scalar_select 0, %s10, %s8
  $region1: #{_lambda_.1} parent=0
    #allocation2 [shape = 'u8[16384]{0}', space=vmem, size = 0x4000, scoped, tag = 'output window, operand 0']
    #allocation3 [shape = 's32[2]{0}', space=sflag, size = 0x8, scoped, tag = 'scoped memory for _lambda_.1']
    %12 = vsyncpa [#allocation3], 0
    %s13 = scalar_lea.sflag [#allocation3], 1
    %14 = vsyncpa %s13, 0
    loop: start=0, step=1, limit=4
    $region2: #{_lambda_.1} parent=1 // loop_pre_header
      _
    $region3: #{_lambda_.1} parent=1 // loop_header
      %s16 = sphi 0, %s20
      %p17 = scmp.ge.s32.totalorder %s16, 4
      %s26 = sphi 0, %s28
      %s29 = sphi 0, %s26
      %s30 = sphi 0, %s29
      %s46 = sphi 0, %s30
      %s52 = sphi 0, %s54
      %s55 = sphi 0, %s52
      %s56 = sphi 0, %s55
      %s72 = sphi 0, %s56
      %s78 = sphi 0, %s80
      %s81 = sphi 0, %s78
      %s82 = sphi 0, %s81
      %s98 = sphi 0, %s82
      %s104 = sphi 0, %s106
      %s107 = sphi 0, %s104
      %s108 = sphi 0, %s107
      %s124 = sphi 0, %s108
      %s128 = sphi 0, %s128
      %s130 = sphi 0, %s128
      %s131 = sphi 0, %s130
      %s145 = sphi 0, %s131
      %s149 = sphi 0, %s149
      %s151 = sphi 0, %s149
      %s152 = sphi 0, %s151
      %s166 = sphi 0, %s152
      %s170 = sphi 0, %s170
      %s172 = sphi 0, %s170
      %s173 = sphi 0, %s172
      %s187 = sphi 0, %s173
      %s193 = sphi 0, %s195
      %s196 = sphi 0, %s193
      %s197 = sphi 0, %s196
      %s213 = sphi 0, %s197
    $region4: #{_lambda_.1} parent=1 // loop_header_branch
      %19 = sbr.rel (%p17) target = $region8
    $region5: #{_lambda_.1} parent=1 // loop_body
      %s21 = ssub.s32 %s16, 1
      %s22 = ssub.s32 %s16, 2
      %s23 = sadd.s32 %s16, 1
      %s24 = ssub.s32 %s16, %s23
      %p25 = scmp.eq.s32.totalorder %s24, 0
      %s27 = sadd.s32 %s26, 1
      %s28 = scalar_select %p25, %s26, %s27
      %p31 = pneg %p25
      %p32 = scmp.eq.s32.totalorder %s16, 1
      %p33 = por %p31, %p32
      %p34 = scmp.ne.s32.totalorder %s26, %s29
      %p35 = scmp.eq.s32.totalorder %s16, 0
      %p36 = por %p34, %p35
      %p37 = scmp.ne.s32.totalorder %s26, %s29
      %p38 = scmp.eq.s32.totalorder %s21, 1
      %p39 = por %p37, %p38
      %p40 = scmp.ne.s32.totalorder %s29, %s30
      %p41 = scmp.eq.s32.totalorder %s21, 0
      %p42 = por %p40, %p41
      %p43 = scmp.ne.s32.totalorder %s29, %s30
      %p44 = scmp.eq.s32.totalorder %s22, 1
      %p45 = por %p43, %p44
      %p47 = scmp.ne.s32.totalorder %s30, %s46
      %p48 = scmp.eq.s32.totalorder %s22, 0
      %p49 = por %p47, %p48
      %s50 = ssub.s32 %s16, %s23
      %p51 = scmp.eq.s32.totalorder %s50, 0
      %s53 = sadd.s32 %s52, 1
      %s54 = scalar_select %p51, %s52, %s53
      %p57 = pneg %p51
      %p58 = scmp.eq.s32.totalorder %s16, 1
      %p59 = por %p57, %p58
      %p60 = scmp.ne.s32.totalorder %s52, %s55
      %p61 = scmp.eq.s32.totalorder %s16, 0
      %p62 = por %p60, %p61
      %p63 = scmp.ne.s32.totalorder %s52, %s55
      %p64 = scmp.eq.s32.totalorder %s21, 1
      %p65 = por %p63, %p64
      %p66 = scmp.ne.s32.totalorder %s55, %s56
      %p67 = scmp.eq.s32.totalorder %s21, 0
      %p68 = por %p66, %p67
      %p69 = scmp.ne.s32.totalorder %s55, %s56
      %p70 = scmp.eq.s32.totalorder %s22, 1
      %p71 = por %p69, %p70
      %p73 = scmp.ne.s32.totalorder %s56, %s72
      %p74 = scmp.eq.s32.totalorder %s22, 0
      %p75 = por %p73, %p74
      %s76 = ssub.s32 %s16, %s23
      %p77 = scmp.eq.s32.totalorder %s76, 0
      %s79 = sadd.s32 %s78, 1
      %s80 = scalar_select %p77, %s78, %s79
      %p83 = pneg %p77
      %p84 = scmp.eq.s32.totalorder %s16, 1
      %p85 = por %p83, %p84
      %p86 = scmp.ne.s32.totalorder %s78, %s81
      %p87 = scmp.eq.s32.totalorder %s16, 0
      %p88 = por %p86, %p87
      %p89 = scmp.ne.s32.totalorder %s78, %s81
      %p90 = scmp.eq.s32.totalorder %s21, 1
      %p91 = por %p89, %p90
      %p92 = scmp.ne.s32.totalorder %s81, %s82
      %p93 = scmp.eq.s32.totalorder %s21, 0
      %p94 = por %p92, %p93
      %p95 = scmp.ne.s32.totalorder %s81, %s82
      %p96 = scmp.eq.s32.totalorder %s22, 1
      %p97 = por %p95, %p96
      %p99 = scmp.ne.s32.totalorder %s82, %s98
      %p100 = scmp.eq.s32.totalorder %s22, 0
      %p101 = por %p99, %p100
      %s102 = ssub.s32 %s16, %s23
      %p103 = scmp.eq.s32.totalorder %s102, 0
      %s105 = sadd.s32 %s104, 1
      %s106 = scalar_select %p103, %s104, %s105
      %p109 = pneg %p103
      %p110 = scmp.eq.s32.totalorder %s16, 1
      %p111 = por %p109, %p110
      %p112 = scmp.ne.s32.totalorder %s104, %s107
      %p113 = scmp.eq.s32.totalorder %s16, 0
      %p114 = por %p112, %p113
      %p115 = scmp.ne.s32.totalorder %s104, %s107
      %p116 = scmp.eq.s32.totalorder %s21, 1
      %p117 = por %p115, %p116
      %p118 = scmp.ne.s32.totalorder %s107, %s108
      %p119 = scmp.eq.s32.totalorder %s21, 0
      %p120 = por %p118, %p119
      %p121 = scmp.ne.s32.totalorder %s107, %s108
      %p122 = scmp.eq.s32.totalorder %s22, 1
      %p123 = por %p121, %p122
      %p125 = scmp.ne.s32.totalorder %s108, %s124
      %p126 = scmp.eq.s32.totalorder %s22, 0
      %p127 = por %p125, %p126
      %s129 = sadd.s32 %s128, 1
      %p132 = scmp.eq.s32.totalorder %s16, 1
      %p133 = scmp.ne.s32.totalorder %s128, %s130
      %p134 = scmp.eq.s32.totalorder %s16, 0
      %p135 = por %p133, %p134
      %p136 = scmp.ne.s32.totalorder %s128, %s130
      %p137 = scmp.eq.s32.totalorder %s21, 1
      %p138 = por %p136, %p137
      %p139 = scmp.ne.s32.totalorder %s130, %s131
      %p140 = scmp.eq.s32.totalorder %s21, 0
      %p141 = por %p139, %p140
      %p142 = scmp.ne.s32.totalorder %s130, %s131
      %p143 = scmp.eq.s32.totalorder %s22, 1
      %p144 = por %p142, %p143
      %p146 = scmp.ne.s32.totalorder %s131, %s145
      %p147 = scmp.eq.s32.totalorder %s22, 0
      %p148 = por %p146, %p147
      %s150 = sadd.s32 %s149, 1
      %p153 = scmp.eq.s32.totalorder %s16, 1
      %p154 = scmp.ne.s32.totalorder %s149, %s151
      %p155 = scmp.eq.s32.totalorder %s16, 0
      %p156 = por %p154, %p155
      %p157 = scmp.ne.s32.totalorder %s149, %s151
      %p158 = scmp.eq.s32.totalorder %s21, 1
      %p159 = por %p157, %p158
      %p160 = scmp.ne.s32.totalorder %s151, %s152
      %p161 = scmp.eq.s32.totalorder %s21, 0
      %p162 = por %p160, %p161
      %p163 = scmp.ne.s32.totalorder %s151, %s152
      %p164 = scmp.eq.s32.totalorder %s22, 1
      %p165 = por %p163, %p164
      %p167 = scmp.ne.s32.totalorder %s152, %s166
      %p168 = scmp.eq.s32.totalorder %s22, 0
      %p169 = por %p167, %p168
      %s171 = sadd.s32 %s170, 1
      %p174 = scmp.eq.s32.totalorder %s16, 1
      %p175 = scmp.ne.s32.totalorder %s170, %s172
      %p176 = scmp.eq.s32.totalorder %s16, 0
      %p177 = por %p175, %p176
      %p178 = scmp.ne.s32.totalorder %s170, %s172
      %p179 = scmp.eq.s32.totalorder %s21, 1
      %p180 = por %p178, %p179
      %p181 = scmp.ne.s32.totalorder %s172, %s173
      %p182 = scmp.eq.s32.totalorder %s21, 0
      %p183 = por %p181, %p182
      %p184 = scmp.ne.s32.totalorder %s172, %s173
      %p185 = scmp.eq.s32.totalorder %s22, 1
      %p186 = por %p184, %p185
      %p188 = scmp.ne.s32.totalorder %s173, %s187
      %p189 = scmp.eq.s32.totalorder %s22, 0
      %p190 = por %p188, %p189
      %s191 = ssub.s32 %s16, %s23
      %p192 = scmp.eq.s32.totalorder %s191, 0
      %s194 = sadd.s32 %s193, 1
      %s195 = scalar_select %p192, %s193, %s194
      %p198 = pneg %p192
      %p199 = scmp.eq.s32.totalorder %s16, 1
      %p200 = por %p198, %p199
      %p201 = scmp.ne.s32.totalorder %s193, %s196
      %p202 = scmp.eq.s32.totalorder %s16, 0
      %p203 = por %p201, %p202
      %p204 = scmp.ne.s32.totalorder %s193, %s196
      %p205 = scmp.eq.s32.totalorder %s21, 1
      %p206 = por %p204, %p205
      %p207 = scmp.ne.s32.totalorder %s196, %s197
      %p208 = scmp.eq.s32.totalorder %s21, 0
      %p209 = por %p207, %p208
      %p210 = scmp.ne.s32.totalorder %s196, %s197
      %p211 = scmp.eq.s32.totalorder %s22, 1
      %p212 = por %p210, %p211
      %p214 = scmp.ne.s32.totalorder %s197, %s213
      %p215 = scmp.eq.s32.totalorder %s22, 0
      %p216 = por %p214, %p215
      %p217 = scmp.le.s32.totalorder 1, %s16
      %p218 = scmp.lt.s32.totalorder %s16, 3
      %p219 = pnand %p217, %p218
      %p220 = pneg %p219
      // Predicated region
      $region9: #{_lambda_.1} parent=5 // pred_check
        _
      $region10: #{_lambda_.1} parent=5 // pred_check_branch
        %222 = sbr.rel (%p219) target = $region12
      $region11: #{_lambda_.1} parent=5 // pred_region
        %s223 = ssub.s32 %s16, 1
        // Predicated region
        $region13: #{_lambda_.1} parent=11 // pred_check
          %p224 = pneg %p141
        $region14: #{_lambda_.1} parent=11 // pred_check_branch
          %226 = sbr.rel (%p224) target = $region16
        $region15: #{_lambda_.1} parent=11 // pred_region
          _
        $region16: #{_lambda_.1} parent=11 // pred_fallthru
          _
        // Predicated region
        $region17: #{_lambda_.1} parent=11 // pred_check
          %p227 = pneg %p162
        $region18: #{_lambda_.1} parent=11 // pred_check_branch
          %229 = sbr.rel (%p227) target = $region20
        $region19: #{_lambda_.1} parent=11 // pred_region
          _
        $region20: #{_lambda_.1} parent=11 // pred_fallthru
          _
        // Predicated region
        $region21: #{_lambda_.1} parent=11 // pred_check
          %p230 = pneg %p183
        $region22: #{_lambda_.1} parent=11 // pred_check_branch
          %232 = sbr.rel (%p230) target = $region24
        $region23: #{_lambda_.1} parent=11 // pred_region
          _
        $region24: #{_lambda_.1} parent=11 // pred_fallthru
          _
      $region12: #{_lambda_.1} parent=5 // pred_fallthru
        _
      %p233 = scmp.lt.s32.totalorder %s16, 2
      // Predicated region
      $region25: #{_lambda_.1} parent=5 // pred_check
        %p234 = pneg %p233
      $region26: #{_lambda_.1} parent=5 // pred_check_branch
        %236 = sbr.rel (%p234) target = $region28
      $region27: #{_lambda_.1} parent=5 // pred_region
        // Predicated region
        $region29: #{_lambda_.1} parent=27 // pred_check
          %p237 = pneg %p36
        $region30: #{_lambda_.1} parent=27 // pred_check_branch
          %239 = sbr.rel (%p237) target = $region32
        $region31: #{_lambda_.1} parent=27 // pred_region
          %s240 = smul.u32 2, %s16
          %p241 = scmp.lt.s32.totalorder %s240, 3
          %s242 = scalar_select %p241, %s240, 3
          %s243 = smul.addr %s242, 8
          %s244 = scalar_lea.vmem %s0, %s243
          %s245 = smul.u32 2, %s16
        $region32: #{_lambda_.1} parent=27 // pred_fallthru
          _
        // Predicated region
        $region33: #{_lambda_.1} parent=27 // pred_check
          %p246 = pneg %p62
        $region34: #{_lambda_.1} parent=27 // pred_check_branch
          %248 = sbr.rel (%p246) target = $region36
        $region35: #{_lambda_.1} parent=27 // pred_region
          %s249 = smul.u32 2, %s16
          %p250 = scmp.lt.s32.totalorder %s249, 3
          %s251 = scalar_select %p250, %s249, 3
          %s252 = smul.addr %s251, 8
          %s253 = scalar_lea.vmem %s1, %s252
          %s254 = smul.u32 2, %s16
        $region36: #{_lambda_.1} parent=27 // pred_fallthru
          _
        // Predicated region
        $region37: #{_lambda_.1} parent=27 // pred_check
          %p255 = pneg %p88
        $region38: #{_lambda_.1} parent=27 // pred_check_branch
          %257 = sbr.rel (%p255) target = $region40
        $region39: #{_lambda_.1} parent=27 // pred_region
          %s258 = smul.u32 2, %s16
          %p259 = scmp.lt.s32.totalorder %s258, 3
          %s260 = scalar_select %p259, %s258, 3
          %s261 = smul.addr %s260, 8
          %s262 = scalar_lea.vmem %s2, %s261
          %s263 = smul.u32 2, %s16
        $region40: #{_lambda_.1} parent=27 // pred_fallthru
          _
        // Predicated region
        $region41: #{_lambda_.1} parent=27 // pred_check
          %p264 = pneg %p114
        $region42: #{_lambda_.1} parent=27 // pred_check_branch
          %266 = sbr.rel (%p264) target = $region44
        $region43: #{_lambda_.1} parent=27 // pred_region
          %s267 = smul.u32 2, %s16
          %p268 = scmp.lt.s32.totalorder %s267, 3
          %s269 = scalar_select %p268, %s267, 3
          %s270 = smul.addr %s269, 8
          %s271 = scalar_lea.vmem %s3, %s270
          %s272 = smul.u32 2, %s16
        $region44: #{_lambda_.1} parent=27 // pred_fallthru
          _
      $region28: #{_lambda_.1} parent=5 // pred_fallthru
        _
      %p273 = scmp.le.s32.totalorder 1, %s16
      %p274 = scmp.lt.s32.totalorder %s16, 3
      %p275 = pnand %p273, %p274
      %p276 = pneg %p275
      // Predicated region
      $region45: #{_lambda_.1} parent=5 // pred_check
        _
      $region46: #{_lambda_.1} parent=5 // pred_check_branch
        %278 = sbr.rel (%p275) target = $region48
      $region47: #{_lambda_.1} parent=5 // pred_region
        %s279 = ssub.s32 %s16, 1
        %s280 = smul.u32 2, %s21
        %p281 = scmp.lt.s32.totalorder %s280, 3
        %s282 = scalar_select %p281, %s280, 3
        %s283 = smul.addr %s282, 8
        %s284 = scalar_lea.vmem %s0, %s283
        %p285 = pneg %p42
        %p286 = pneg %p39
        %s287 = smul.u32 2, %s21
        %p288 = scmp.lt.s32.totalorder %s287, 3
        %s289 = scalar_select %p288, %s287, 3
        %s290 = smul.addr %s289, 8
        %s291 = scalar_lea.vmem %s1, %s290
        %p292 = pneg %p68
        %p293 = pneg %p65
        %s294 = smul.u32 2, %s21
        %p295 = scmp.lt.s32.totalorder %s294, 3
        %s296 = scalar_select %p295, %s294, 3
        %s297 = smul.addr %s296, 8
        %s298 = scalar_lea.vmem %s2, %s297
        %p299 = pneg %p94
        %p300 = pneg %p91
        %s301 = smul.u32 2, %s21
        %p302 = scmp.lt.s32.totalorder %s301, 3
        %s303 = scalar_select %p302, %s301, 3
        %s304 = smul.addr %s303, 8
        %s305 = scalar_lea.vmem %s3, %s304
        %p306 = pneg %p120
        %p307 = pneg %p117
        %p308 = pneg %p141
        %p309 = pneg %p138
        %p310 = pneg %p162
        %p311 = pneg %p159
        %p312 = pneg %p183
        %p313 = pneg %p180
        %p314 = pneg %p209
        %p315 = pneg %p206
        %s316 = sand.u32 %s196, 1
        %s317 = scalar_lea.sflag [#allocation3], %s316
        %s318 = sand.u32 %s196, 1
        %s319 = smul.addr %s318, 16
        %s320 = scalar_lea.vmem [#allocation2], %s319
        %s321 = smul.u32 2, %s21
        %p322 = scmp.lt.s32.totalorder %s321, 3
        %s323 = scalar_select %p322, %s321, 3
        %s324 = smul.addr %s323, 8
        %s325 = scalar_lea.vmem %s0, %s324
        %s326 = smul.u32 2, %s21
        %s327 = smul.u32 2, %s21
        %p328 = scmp.lt.s32.totalorder %s327, 3
        %s329 = scalar_select %p328, %s327, 3
        %s330 = smul.addr %s329, 8
        %s331 = scalar_lea.vmem %s1, %s330
        %s332 = smul.u32 2, %s21
        %s333 = smul.u32 2, %s21
        %p334 = scmp.lt.s32.totalorder %s333, 3
        %s335 = scalar_select %p334, %s333, 3
        %s336 = smul.addr %s335, 8
        %s337 = scalar_lea.vmem %s2, %s336
        %s338 = smul.u32 2, %s21
        %s339 = smul.u32 2, %s21
        %p340 = scmp.lt.s32.totalorder %s339, 3
        %s341 = scalar_select %p340, %s339, 3
        %s342 = smul.addr %s341, 8
        %s343 = scalar_lea.vmem %s3, %s342
        %s344 = smul.u32 2, %s21
        %s345 = smul.u32 2, %s21
        %v347 = vld [vmem:[%s337] sm:$0xff]
        %v348 = vld [vmem:[%s337 + $0x8] sm:$0xff]
        %v349 = vrcp.pop %v347
        %v350 = vmul.f32 1.0, %v349
        %v351 = vrcp.pop %v348
        %v352 = vmul.f32 1.0, %v351
        %v353 = vld [vmem:[%s325] sm:$0xff]
        %v354 = vld [vmem:[%s325 + $0x8] sm:$0xff]
        %v355 = vpack.c.bf16 %v354, %v353
        %v356 = vld [vmem:[%s4] sm:$0xff]
        %v357 = vld [vmem:[%s4 + $0x8] sm:$0xff]
        %v358 = vpack.c.bf16 %v357, %v356
        %v359 = vld [vmem:[%s331] sm:$0xff]
        %v360 = vld [vmem:[%s331 + $0x8] sm:$0xff]
        %362 = vset.pattern.permute.xlu0 0
        %363 = vperm.xlu0 %362, %v350
        %v364 = vpop.permute.xlu0 %363
        %367 = vset.pattern.permute.xlu0 0
        %368 = vperm.xlu0 %367, %v352
        %v369 = vpop.permute.xlu0 %368
        %v371 = vmul.f32 %v359, %v364
        %v372 = vmul.f32 %v360, %v369
        %v373 = vpack.c.bf16 %v372, %v371
        %v374 = vld [vmem:[%s5] sm:$0xff]
        %v375 = vld [vmem:[%s5 + $0x8] sm:$0xff]
        %v376 = vld [vmem:[%s5 + $0x10] sm:$0xff]
        %v377 = vpack.c.bf16 %v375, %v374
        %v378 = vpack.c.bf16 %v376, %v376
        %vm379 = vcmask 195584
        %v381 = vsel %vm379, %v373, 0
        %vm383 = vcmask 1043456
        %v385 = vsel %vm383, %v378, 0
        %387 = vmatprep.subr.bf16.mxu0 0
        %388 = vmatpush1.bf16.msra.mxu0 0
        %389 = vmatprep.subr.bf16.mxu0 0
        %390 = vmatpush1.bf16.msra.mxu0 0
        %391 = vmatprep.subr.bf16.mxu0 0
        %392 = vmatpush1.bf16.msra.mxu0 0
        %393 = vmatprep.subr.bf16.mxu0 0
        %394 = vmatpush1.bf16.msra.mxu0 0
        %395 = vmatprep.subr.bf16.mxu0 0
        %396 = vmatpush1.bf16.msra.mxu0 0
        %397 = vmatprep.subr.bf16.mxu0 0
        %398 = vmatpush1.bf16.msra.mxu0 0
        %399 = vmatprep.subr.bf16.mxu0 0
        %400 = vmatpush1.bf16.msra.mxu0 %v385
        %401 = vmatprep.subr.bf16.mxu0 0
        %402 = vmatpush1.bf16.msra.mxu0 %v377
        %403 = vmatprep.subr.bf16.mxu0 0
        %404 = vmatpush2.bf16.msra.mxu0 0
        %405 = vmatprep.subr.bf16.mxu0 0
        %406 = vmatpush2.bf16.msra.mxu0 0
        %407 = vmatprep.subr.bf16.mxu0 0
        %408 = vmatpush2.bf16.msra.mxu0 0
        %409 = vmatprep.subr.bf16.mxu0 0
        %410 = vmatpush2.bf16.msra.mxu0 0
        %411 = vmatprep.subr.bf16.mxu0 0
        %412 = vmatpush2.bf16.msra.mxu0 0
        %413 = vmatprep.subr.bf16.mxu0 0
        %414 = vmatpush2.bf16.msra.mxu0 0
        %415 = vmatprep.subr.bf16.mxu0 0
        %416 = vmatpush2.bf16.msra.mxu0 0
        %417 = vmatprep.subr.bf16.mxu0 0
        %418 = vmatpush2.bf16.msra.mxu0 0
        %419 = vmatprep.mubr.bf16.mxu0 0
        %420 = vmatmul.mubr.bf16.gmra.mxu0 %v381
        %v421 = vpop.f32.mrf.mxu0
        %v422 = vadd.f32 0.0, %v421
        %v423 = vpop.f32.mrf.mxu0
        %v424 = vpop.f32.mrf.mxu0
        %v425 = vadd.f32 0.0, %v424
        %v426 = vpop.f32.mrf.mxu0
        %427 = vdwg.mxu0
        %vm428 = vcmask 130048
        %v430 = vsel %vm428, %v355, 0
        %432 = vmatprep.subr.bf16.mxu0 0
        %433 = vmatpush1.bf16.msra.mxu0 0
        %434 = vmatprep.subr.bf16.mxu0 0
        %435 = vmatpush1.bf16.msra.mxu0 0
        %436 = vmatprep.subr.bf16.mxu0 0
        %437 = vmatpush1.bf16.msra.mxu0 0
        %438 = vmatprep.subr.bf16.mxu0 0
        %439 = vmatpush1.bf16.msra.mxu0 0
        %440 = vmatprep.subr.bf16.mxu0 0
        %441 = vmatpush1.bf16.msra.mxu0 0
        %442 = vmatprep.subr.bf16.mxu0 0
        %443 = vmatpush1.bf16.msra.mxu0 0
        %444 = vmatprep.subr.bf16.mxu0 0
        %445 = vmatpush1.bf16.msra.mxu0 0
        %446 = vmatprep.subr.bf16.mxu0 0
        %447 = vmatpush1.bf16.msra.mxu0 %v358
        %448 = vmatprep.subr.bf16.mxu0 0
        %449 = vmatpush2.bf16.msra.mxu0 0
        %450 = vmatprep.subr.bf16.mxu0 0
        %451 = vmatpush2.bf16.msra.mxu0 0
        %452 = vmatprep.subr.bf16.mxu0 0
        %453 = vmatpush2.bf16.msra.mxu0 0
        %454 = vmatprep.subr.bf16.mxu0 0
        %455 = vmatpush2.bf16.msra.mxu0 0
        %456 = vmatprep.subr.bf16.mxu0 0
        %457 = vmatpush2.bf16.msra.mxu0 0
        %458 = vmatprep.subr.bf16.mxu0 0
        %459 = vmatpush2.bf16.msra.mxu0 0
        %460 = vmatprep.subr.bf16.mxu0 0
        %461 = vmatpush2.bf16.msra.mxu0 0
        %462 = vmatprep.subr.bf16.mxu0 0
        %463 = vmatpush2.bf16.msra.mxu0 0
        %464 = vmatprep.mubr.bf16.mxu0 0
        %465 = vmatmul.mubr.bf16.gmra.mxu0 %v430
        %v466 = vpop.f32.mrf.mxu0
        %v467 = vadd.f32 %v422, %v466
        %v468 = vpop.f32.mrf.mxu0
        %v469 = vpop.f32.mrf.mxu0
        %v470 = vadd.f32 %v425, %v469
        %v471 = vpop.f32.mrf.mxu0
        %472 = vdwg.mxu0
        %v473 = vld [vmem:[%s343] sm:$0xff]
        %v474 = vld [vmem:[%s343 + $0x8] sm:$0xff]
        %v475 = vadd.f32 %v467, %v473
        %v476 = vadd.f32 %v470, %v474
        %v477 = vld [vmem:[%s6] sm:$0x1]
        %v479 = vlaneseq
        %v480 = vshrl.u32 %v479, 7
        %v481 = vsub.s32 0, %v480
        %v482 = vrot.slane %v477, %v481
        %v484 = vadd.f32 %v475, %v482
        %v485 = vadd.f32 %v476, %v482
        %486 = vst [vmem:[%s320] sm:$0xff] %v484
        %487 = vst [vmem:[%s320 + $0x8] sm:$0xff] %v485
        %s488 = sand.u32 %s196, 1
        %s489 = scalar_lea.sflag [#allocation3], %s488
        %s490 = sand.u32 %s196, 1
        %s491 = smul.addr %s490, 16
        %s492 = scalar_lea.vmem [#allocation2], %s491
        // Predicated region
        $region49: #{_lambda_.1} parent=47 // pred_check
          %p493 = pneg %p206
        $region50: #{_lambda_.1} parent=47 // pred_check_branch
          %495 = sbr.rel (%p493) target = $region52
        $region51: #{_lambda_.1} parent=47 // pred_region
          %s496 = smul.u32 2, %s21
          %s498 = ssub.s32 256, 256
          %499 = vsyncadd %s489, %s498
          %s500 = smul.addr %s496, 128
          %s501 = scalar_lea.hbm %s7, %s500
          %s502 = sshll.u32 %s492, 4
          %s503 = int_to_ptr.vmem [resolvable:$true] %s502
          %508 = dma.vmem_to_hbm [thread:$0]  %s503, 256, %s501, %s489, 128, 128, 8
        $region52: #{_lambda_.1} parent=47 // pred_fallthru
          _
      $region48: #{_lambda_.1} parent=5 // pred_fallthru
        _
      %p509 = scmp.le.s32.totalorder 2, %s16
      // Predicated region
      $region53: #{_lambda_.1} parent=5 // pred_check
        %p510 = pneg %p509
      $region54: #{_lambda_.1} parent=5 // pred_check_branch
        %512 = sbr.rel (%p510) target = $region56
      $region55: #{_lambda_.1} parent=5 // pred_region
        %s513 = ssub.s32 %s16, 2
        // Predicated region
        $region57: #{_lambda_.1} parent=55 // pred_check
          %p514 = pneg %p212
        $region58: #{_lambda_.1} parent=55 // pred_check_branch
          %516 = sbr.rel (%p514) target = $region60
        $region59: #{_lambda_.1} parent=55 // pred_region
          %s517 = sand.u32 %s197, 1
          %s518 = scalar_lea.sflag [#allocation3], %s517
          %s519 = sand.u32 %s197, 1
          %s520 = smul.addr %s519, 16
          %s521 = scalar_lea.vmem [#allocation2], %s520
          %522 = dma.done %s518, 256
        $region60: #{_lambda_.1} parent=55 // pred_fallthru
          _
      $region56: #{_lambda_.1} parent=5 // pred_fallthru
        _
    $region6: #{_lambda_.1} parent=1 // loop_footer
      %s20 = sadd.s32 1, %s16
    $region7: #{_lambda_.1} parent=1 // loop_footer_branch
      %15 = sbr.rel target = $region3
    $region8: #{_lambda_.1} parent=1 // loop_exit
      _
    %523 = vsyncpa [#allocation3], 1
    %s524 = scalar_lea.sflag [#allocation3], 1
    %525 = vsyncpa %s524, 1

</llo_original>
